<compile_context>
chip_gen: v7x
topology: tpu7x:2x2x1
jax: 0.10.0
libtpu: 0.0.40
codegen_flags: <defaults>
</compile_context>

<pallas_src>
import jax
import jax.numpy as jnp
import numpy as np
from jax.experimental import pallas as pl
from jax.experimental.pallas import tpu as pltpu


_CH = 7          # 4 quat + 3 trans channels per record
_MAX_PACK = 18   # 18 * 7 = 126 lanes <= 128

# Keep (input + output) double buffers well under v5e's 16 MiB scoped-VMEM
# default: 4096 packed rows x 128 padded lanes x 4 B = 2 MiB per buffer,
# ~8 MiB total.  Raise vmem_limit_bytes via pltpu.CompilerParams if sweeping
# larger tiles.
_MAX_TILE_PACKED_ROWS = 4096


def _round_up(a, b):
    return (a + b - 1) // b * b


def _choose_pack(m):
    """Largest records-per-row that divides M and keeps the row <= 128 lanes."""
    for p in range(_MAX_PACK, 0, -1):
        if p * _CH <= 128 and m % p == 0:
            return p
    return 1


# ------------------------------- constants ---------------------------------


def _quat_rows(weight, bias, inv_scale, pack):
    """Common per-lane constant rows (all length pack*7, f32)."""
    f32 = jnp.float32
    bias_row = jnp.tile(
        jnp.concatenate([bias.astype(f32).reshape(4), jnp.zeros((3,), f32)]), pack)
    scale_row = jnp.tile(
        jnp.asarray([0, 0, 0, 0, 1, 1, 1], f32) * jnp.asarray(inv_scale, f32), pack)
    # ReLU floor: 0 on quat lanes (-> max == ReLU), -inf on trans lanes (pass-through).
    floor_row = jnp.tile(
        jnp.asarray([0.0, 0.0, 0.0, 0.0, -np.inf, -np.inf, -np.inf], f32), pack)
    return bias_row, scale_row, floor_row


def _build_vpu_consts(weight, bias, inv_scale, pack):
    """[9, pack*7]: rows 0..6 = coefficients for lane displacement d=-3..+3
    (row 3 also carries the trans 1/scale), row 7 = bias, row 8 = ReLU floor."""
    f32 = jnp.float32
    w = weight.astype(f32)
    inv = jnp.asarray(inv_scale, f32)
    zero = jnp.zeros((), f32)
    rows = []
    for d in range(-3, 4):
        vals = []
        for j in range(_CH):           # output channel within the record
            i = j - d                   # source channel = output lane - displacement
            if j < 4 and 0 <= i < 4:
                vals.append(w[j, i])    # quat: y[j] += x[i] * weight[j, i]
            elif j >= 4 and d == 0:
                vals.append(inv)        # trans: y[j] = x[j] / scale
            else:
                vals.append(zero)
        rows.append(jnp.tile(jnp.stack(vals), pack))
    bias_row, _, floor_row = _quat_rows(weight, bias, inv_scale, pack)
    rows.append(bias_row)
    rows.append(floor_row)
    return jnp.stack(rows)


def _build_mxu_consts(weight, bias, inv_scale, pack):
    """(mq [W, W] block-diag quat transform, cvec [3, W] = bias/scale/floor rows)."""
    f32 = jnp.float32
    w_t = weight.astype(f32).T                                  # [in=4, out=4]
    m7q = jnp.zeros((_CH, _CH), f32).at[:4, :4].set(w_t)        # quat block only
    mq = jnp.kron(jnp.eye(pack, dtype=f32), m7q)                # [W, W]
    bias_row, scale_row, floor_row = _quat_rows(weight, bias, inv_scale, pack)
    return mq, jnp.stack([bias_row, scale_row, floor_row])


# -------------------------------- kernels ----------------------------------


def _make_vpu_kernel(sign, width):
    """Pure VPU/XLU body: 6 lane rolls x coefficient rows + bias, masked ReLU."""
    def kernel(x_ref, coef_ref, o_ref):
        x = x_ref[...].astype(jnp.float32)
        # d = 0 term also carries the trans 1/scale coefficients.
        y = coef_ref[7:8, :] + x * coef_ref[3:4, :]
        for d in (-3, -2, -1, 1, 2, 3):
            shifted = pltpu.roll(x, shift=(sign * d) % width, axis=1)
            y = y + shifted * coef_ref[3 + d:4 + d, :]
        # Lane-selective ReLU via precomputed floor row (no per-step iota/compare).
        o_ref[...] = jnp.maximum(y, coef_ref[8:9, :]).astype(o_ref.dtype)
    return kernel


def _mxu_kernel(x_ref, mq_ref, cvec_ref, o_ref):
    x = x_ref[...].astype(jnp.float32)
    # Block-diagonal quat mix on the MXU (trans columns of mq are zero).
    y = jnp.dot(x, mq_ref[...], preferred_element_type=jnp.float32)
    # Trans scale + bias stay on the VPU: exact f32, independent of MXU precision.
    y = y + x * cvec_ref[1:2, :] + cvec_ref[0:1, :]
    o_ref[...] = jnp.maximum(y, cvec_ref[2:3, :]).astype(o_ref.dtype)


# ----------------------------- pallas driver --------------------------------


def _run_packed(x_packed, consts, kernel, tile_packed_rows, min_steps):
    mp, width = x_packed.shape
    # Largest sublane-aligned tile that stays inside the VMEM budget and leaves
    # >= min_steps grid steps so the "parallel" row axis shards across both
    # v7x TensorCores.
    tile = min(int(tile_packed_rows), _MAX_TILE_PACKED_ROWS)
    tile = max(_round_up(tile, 8), 8)
    target = max(pl.cdiv(mp, min_steps), 8)
    tm = min(tile, _round_up(target, 8))
    if tm >= mp:
        tm = mp            # single full-extent block (any row count is legal)
    grid = pl.cdiv(mp, tm)

    in_specs = [pl.BlockSpec((tm, width), lambda i: (i, 0))]
    for c in consts:
        in_specs.append(pl.BlockSpec(c.shape, lambda i: (0, 0)))   # fetched once

    return pl.pallas_call(
        kernel,
        out_shape=jax.ShapeDtypeStruct((mp, width), x_packed.dtype),
        grid_spec=pltpu.PrefetchScalarGridSpec(
            num_scalar_prefetch=0,
            grid=(grid,),
            in_specs=in_specs,
            out_specs=pl.BlockSpec((tm, width), lambda i: (i, 0)),
        ),
        compiler_params=pltpu.CompilerParams(
            dimension_semantics=("parallel",),   # megacore sharding on v7x
        ),
        # NOTE: if profiling shows exposed DMA at small per-step times, add
        # pipeline_mode=pl.Buffered(3) to the row-tile BlockSpec above.
    )(x_packed, *consts)


_IMPL_CACHE = {}


def _select_impl(pack):
    """Once per pack width: pick the roll/VPU kernel if it lowers and matches an
    exact reference (also detects pltpu.roll's rotation direction); otherwise
    fall back to the MXU block-diagonal kernel."""
    pack = int(pack)
    if pack in _IMPL_CACHE:
        return _IMPL_CACHE[pack]

    width = pack * _CH
    rng = np.random.RandomState(0)
    m_test = pack * 16
    x_np = rng.randn(m_test, _CH).astype(np.float32)
    w_np = rng.randn(4, 4).astype(np.float32)
    b_np = rng.randn(4).astype(np.float32)
    inv = np.float32(1.0 / 3.0)
    ref = np.concatenate(
        [np.maximum(x_np[:, :4] @ w_np.T + b_np, 0.0), x_np[:, 4:] * inv], axis=-1)

    x_packed = jnp.asarray(x_np).reshape(m_test // pack, width)
    coef = _build_vpu_consts(jnp.asarray(w_np), jnp.asarray(b_np),
                             jnp.float32(inv), pack)

    choice = ("mxu", 0)
    for sign in (1, -1):
        try:
            out = _run_packed(x_packed, (coef,), _make_vpu_kernel(sign, width),
                              tile_packed_rows=8, min_steps=1)
            out = np.asarray(jax.block_until_ready(out)).reshape(m_test, _CH)
        except Exception:      # roll unsupported for this shape -> MXU path
            break
        if np.allclose(out, ref, rtol=1e-5, atol=1e-5):
            choice = ("vpu", sign)
            break
    _IMPL_CACHE[pack] = choice
    return choice


def ipa_norm_out(affine_t, weight, bias, *, scale_factor=100.0,
                 tile_records=65536, min_steps=8):
    """affine_t: [B, N, 7]; weight: [4, 4] (nn.Linear layout); bias: [4] -> [B, N, 7]."""
    b, n, c = affine_t.shape
    assert c == _CH
    m = b * n

    pack = _choose_pack(m)                    # records per lane-dense packed row
    width = pack * _CH
    mp = m // pack
    x_packed = affine_t.reshape(mp, width)    # free row-major bitcast reshape

    inv_scale = jnp.float32(1.0) / jnp.float32(scale_factor)
    impl, sign = _select_impl(pack)
    if impl == "vpu":
        consts = (_build_vpu_consts(weight, bias, inv_scale, pack),)
        kernel = _make_vpu_kernel(sign, width)
    else:
        consts = _build_mxu_consts(weight, bias, inv_scale, pack)
        kernel = _mxu_kernel

    tile_packed_rows = max(int(tile_records) // pack, 8)
    out = _run_packed(x_packed, consts, kernel, tile_packed_rows, min_steps)
    return out.reshape(b, n, c)


# -------------------------------- reference ---------------------------------


def _reference(affine_t, weight, bias, scale_factor=100.0):
    quat = jnp.maximum(
        jnp.einsum("bnk,jk->bnj", affine_t[..., :4], weight,
                   precision=jax.lax.Precision.HIGHEST) + bias, 0.0)
    trans = affine_t[..., 4:] / scale_factor
    return jnp.concatenate([quat, trans], axis=-1)


if __name__ == "__main__":
    key = jax.random.PRNGKey(0)
    k_x, k_w, k_b, k_x2 = jax.random.split(key, 4)

    # Small shape consistent with the module: [B=2, N=8, 7] (4 quat + 3 trans).
    affine_t = jax.random.normal(k_x, (2, 8, 7), dtype=jnp.float32)
    weight = jax.random.normal(k_w, (4, 4), dtype=jnp.float32) * 0.5   # nn.Linear(4, 4)
    bias = jax.random.normal(k_b, (4,), dtype=jnp.float32) * 0.1

    out = jax.block_until_ready(ipa_norm_out(affine_t, weight, bias, scale_factor=100.0))
    ref = _reference(affine_t, weight, bias, scale_factor=100.0)
    np.testing.assert_allclose(np.asarray(out), np.asarray(ref), rtol=1e-5, atol=1e-5)

    # Larger case exercising the packed layout with a multi-step "parallel" grid.
    affine_big = jax.random.normal(k_x2, (2, 1024, 7), dtype=jnp.float32)
    out_big = jax.block_until_ready(
        ipa_norm_out(affine_big, weight, bias, scale_factor=100.0, tile_records=256))
    ref_big = _reference(affine_big, weight, bias, scale_factor=100.0)
    np.testing.assert_allclose(np.asarray(out_big), np.asarray(ref_big),
                               rtol=1e-5, atol=1e-5)

    print("KERNEL_OK")
</pallas_src>

<mosaic_0001>
module attributes {stable_mosaic.version = 11 : i64} {
  func.func @kernel(%arg0: i32, %arg1: memref<8x112xf32, #tpu.memory_space<vmem>>, %arg2: memref<9x112xf32, #tpu.memory_space<vmem>>, %arg3: memref<8x112xf32, #tpu.memory_space<vmem>>) attributes {dimension_semantics = [#tpu.dimension_semantics<parallel>], iteration_bounds = array<i64: 2>, scalar_prefetch = 0 : i64, scratch_operands = 0 : i64, tpu.core_type = #tpu.core_type<tc>, window_params = [{transform_indices = @transform_0, window_bounds = array<i64: 8, 112>}, {pipeline_mode = #tpu.pipeline_mode<synchronous>, transform_indices = @transform_1, window_bounds = array<i64: 9, 112>}, {transform_indices = @transform_2, window_bounds = array<i64: 8, 112>}]} {
    %c0 = arith.constant 0 : index
    %c0_0 = arith.constant 0 : index
    %0 = vector.load %arg1[%c0, %c0_0] : memref<8x112xf32, #tpu.memory_space<vmem>>, vector<8x112xf32>
    %c7 = arith.constant 7 : index
    %c0_1 = arith.constant 0 : index
    %1 = vector.load %arg2[%c7, %c0_1] : memref<9x112xf32, #tpu.memory_space<vmem>>, vector<1x112xf32>
    %c3 = arith.constant 3 : index
    %c0_2 = arith.constant 0 : index
    %2 = vector.load %arg2[%c3, %c0_2] : memref<9x112xf32, #tpu.memory_space<vmem>>, vector<1x112xf32>
    %3 = vector.broadcast %2 : vector<1x112xf32> to vector<8x112xf32>
    %4 = arith.mulf %0, %3 : vector<8x112xf32>
    %5 = vector.broadcast %1 : vector<1x112xf32> to vector<8x112xf32>
    %6 = arith.addf %5, %4 : vector<8x112xf32>
    %c109_i32 = arith.constant 109 : i32
    %7 = tpu.dynamic_rotate %0 by %c109_i32 dim 1 : vector<8x112xf32>, i32 -> vector<8x112xf32>
    %c0_3 = arith.constant 0 : index
    %c0_4 = arith.constant 0 : index
    %8 = vector.load %arg2[%c0_3, %c0_4] : memref<9x112xf32, #tpu.memory_space<vmem>>, vector<1x112xf32>
    %9 = vector.broadcast %8 : vector<1x112xf32> to vector<8x112xf32>
    %10 = arith.mulf %7, %9 : vector<8x112xf32>
    %11 = arith.addf %6, %10 : vector<8x112xf32>
    %c110_i32 = arith.constant 110 : i32
    %12 = tpu.dynamic_rotate %0 by %c110_i32 dim 1 : vector<8x112xf32>, i32 -> vector<8x112xf32>
    %c1 = arith.constant 1 : index
    %c0_5 = arith.constant 0 : index
    %13 = vector.load %arg2[%c1, %c0_5] : memref<9x112xf32, #tpu.memory_space<vmem>>, vector<1x112xf32>
    %14 = vector.broadcast %13 : vector<1x112xf32> to vector<8x112xf32>
    %15 = arith.mulf %12, %14 : vector<8x112xf32>
    %16 = arith.addf %11, %15 : vector<8x112xf32>
    %c111_i32 = arith.constant 111 : i32
    %17 = tpu.dynamic_rotate %0 by %c111_i32 dim 1 : vector<8x112xf32>, i32 -> vector<8x112xf32>
    %c2 = arith.constant 2 : index
    %c0_6 = arith.constant 0 : index
    %18 = vector.load %arg2[%c2, %c0_6] : memref<9x112xf32, #tpu.memory_space<vmem>>, vector<1x112xf32>
    %19 = vector.broadcast %18 : vector<1x112xf32> to vector<8x112xf32>
    %20 = arith.mulf %17, %19 : vector<8x112xf32>
    %21 = arith.addf %16, %20 : vector<8x112xf32>
    %c1_i32 = arith.constant 1 : i32
    %22 = tpu.dynamic_rotate %0 by %c1_i32 dim 1 : vector<8x112xf32>, i32 -> vector<8x112xf32>
    %c4 = arith.constant 4 : index
    %c0_7 = arith.constant 0 : index
    %23 = vector.load %arg2[%c4, %c0_7] : memref<9x112xf32, #tpu.memory_space<vmem>>, vector<1x112xf32>
    %24 = vector.broadcast %23 : vector<1x112xf32> to vector<8x112xf32>
    %25 = arith.mulf %22, %24 : vector<8x112xf32>
    %26 = arith.addf %21, %25 : vector<8x112xf32>
    %c2_i32 = arith.constant 2 : i32
    %27 = tpu.dynamic_rotate %0 by %c2_i32 dim 1 : vector<8x112xf32>, i32 -> vector<8x112xf32>
    %c5 = arith.constant 5 : index
    %c0_8 = arith.constant 0 : index
    %28 = vector.load %arg2[%c5, %c0_8] : memref<9x112xf32, #tpu.memory_space<vmem>>, vector<1x112xf32>
    %29 = vector.broadcast %28 : vector<1x112xf32> to vector<8x112xf32>
    %30 = arith.mulf %27, %29 : vector<8x112xf32>
    %31 = arith.addf %26, %30 : vector<8x112xf32>
    %c3_i32 = arith.constant 3 : i32
    %32 = tpu.dynamic_rotate %0 by %c3_i32 dim 1 : vector<8x112xf32>, i32 -> vector<8x112xf32>
    %c6 = arith.constant 6 : index
    %c0_9 = arith.constant 0 : index
    %33 = vector.load %arg2[%c6, %c0_9] : memref<9x112xf32, #tpu.memory_space<vmem>>, vector<1x112xf32>
    %34 = vector.broadcast %33 : vector<1x112xf32> to vector<8x112xf32>
    %35 = arith.mulf %32, %34 : vector<8x112xf32>
    %36 = arith.addf %31, %35 : vector<8x112xf32>
    %c8 = arith.constant 8 : index
    %c0_10 = arith.constant 0 : index
    %37 = vector.load %arg2[%c8, %c0_10] : memref<9x112xf32, #tpu.memory_space<vmem>>, vector<1x112xf32>
    %38 = vector.broadcast %37 : vector<1x112xf32> to vector<8x112xf32>
    %39 = arith.maximumf %36, %38 : vector<8x112xf32>
    %c0_11 = arith.constant 0 : index
    %c0_12 = arith.constant 0 : index
    %40 = vector.load %arg3[%c0_11, %c0_12] : memref<8x112xf32, #tpu.memory_space<vmem>>, vector<8x112xf32>
    tpu.vector_store %arg3[%c0_11, %c0_12], %39 {strides = array<i32>} : memref<8x112xf32, #tpu.memory_space<vmem>>, vector<8x112xf32>,
    return
  }
  func.func @transform_0(%arg0: i32) -> (i32, i32) {
    %c0_i32 = arith.constant 0 : i32
    %c0_i32_0 = arith.constant 0 : i32
    return %arg0, %c0_i32 : i32, i32
  }
  func.func @transform_1(%arg0: i32) -> (i32, i32) {
    %c0_i32 = arith.constant 0 : i32
    %c0_i32_0 = arith.constant 0 : i32
    %c0_i32_1 = arith.constant 0 : i32
    return %c0_i32, %c0_i32_0 : i32, i32
  }
  func.func @transform_2(%arg0: i32) -> (i32, i32) {
    %c0_i32 = arith.constant 0 : i32
    %c0_i32_0 = arith.constant 0 : i32
    return %arg0, %c0_i32 : i32, i32
  }
}

module attributes {stable_mosaic.version = 11 : i64} {
  func.func @_mxu_kernel(%arg0: i32, %arg1: memref<1x112xf32, #tpu.memory_space<vmem>>, %arg2: memref<112x112xf32, #tpu.memory_space<vmem>>, %arg3: memref<3x112xf32, #tpu.memory_space<vmem>>, %arg4: memref<1x112xf32, #tpu.memory_space<vmem>>) attributes {dimension_semantics = [#tpu.dimension_semantics<parallel>], iteration_bounds = array<i64: 1>, scalar_prefetch = 0 : i64, scratch_operands = 0 : i64, tpu.core_type = #tpu.core_type<tc>, window_params = [{transform_indices = @transform_0, window_bounds = array<i64: 1, 112>}, {pipeline_mode = #tpu.pipeline_mode<synchronous>, transform_indices = @transform_1, window_bounds = array<i64: 112, 112>}, {pipeline_mode = #tpu.pipeline_mode<synchronous>, transform_indices = @transform_2, window_bounds = array<i64: 3, 112>}, {transform_indices = @transform_3, window_bounds = array<i64: 1, 112>}]} {
    %c0 = arith.constant 0 : index
    %c0_0 = arith.constant 0 : index
    %0 = vector.load %arg1[%c0, %c0_0] : memref<1x112xf32, #tpu.memory_space<vmem>>, vector<1x112xf32>
    %c0_1 = arith.constant 0 : index
    %c0_2 = arith.constant 0 : index
    %1 = vector.load %arg2[%c0_1, %c0_2] : memref<112x112xf32, #tpu.memory_space<vmem>>, vector<112x112xf32>
    %cst = arith.constant dense<0.000000e+00> : vector<1x112xf32>
    %2 = tpu.matmul %0, %1, %cst {dimension_numbers = #tpu.dot_dimension_numbers<[1], [0], [0], [1], [0, 0, 1, 1], [], []>} : vector<1x112xf32>, vector<112x112xf32>, vector<1x112xf32> -> vector<1x112xf32>
    %c1 = arith.constant 1 : index
    %c0_3 = arith.constant 0 : index
    %3 = vector.load %arg3[%c1, %c0_3] : memref<3x112xf32, #tpu.memory_space<vmem>>, vector<1x112xf32>
    %4 = arith.mulf %0, %3 : vector<1x112xf32>
    %5 = arith.addf %2, %4 : vector<1x112xf32>
    %c0_4 = arith.constant 0 : index
    %c0_5 = arith.constant 0 : index
    %6 = vector.load %arg3[%c0_4, %c0_5] : memref<3x112xf32, #tpu.memory_space<vmem>>, vector<1x112xf32>
    %7 = arith.addf %5, %6 : vector<1x112xf32>
    %c2 = arith.constant 2 : index
    %c0_6 = arith.constant 0 : index
    %8 = vector.load %arg3[%c2, %c0_6] : memref<3x112xf32, #tpu.memory_space<vmem>>, vector<1x112xf32>
    %9 = arith.maximumf %7, %8 : vector<1x112xf32>
    %c0_7 = arith.constant 0 : index
    %c0_8 = arith.constant 0 : index
    %10 = vector.load %arg4[%c0_7, %c0_8] : memref<1x112xf32, #tpu.memory_space<vmem>>, vector<1x112xf32>
    tpu.vector_store %arg4[%c0_7, %c0_8], %9 {strides = array<i32>} : memref<1x112xf32, #tpu.memory_space<vmem>>, vector<1x112xf32>,
    return
  }
  func.func @transform_0(%arg0: i32) -> (i32, i32) {
    %c0_i32 = arith.constant 0 : i32
    %c0_i32_0 = arith.constant 0 : i32
    return %arg0, %c0_i32 : i32, i32
  }
  func.func @transform_1(%arg0: i32) -> (i32, i32) {
    %c0_i32 = arith.constant 0 : i32
    %c0_i32_0 = arith.constant 0 : i32
    %c0_i32_1 = arith.constant 0 : i32
    return %c0_i32, %c0_i32_0 : i32, i32
  }
  func.func @transform_2(%arg0: i32) -> (i32, i32) {
    %c0_i32 = arith.constant 0 : i32
    %c0_i32_0 = arith.constant 0 : i32
    %c0_i32_1 = arith.constant 0 : i32
    return %c0_i32, %c0_i32_0 : i32, i32
  }
  func.func @transform_3(%arg0: i32) -> (i32, i32) {
    %c0_i32 = arith.constant 0 : i32
    %c0_i32_0 = arith.constant 0 : i32
    return %arg0, %c0_i32 : i32, i32
  }
}

</mosaic_0001>

<llo_original>
// kernel: tpu_custom_call.1
$region0: #{tpu_custom_call.1}
  #allocation0 [shape = 'u32[]', space=smem, size = 0x4, offset = 0x4, fixed_abs, tag = 'smem constant byte address 0x4 - core index']
  #allocation1 [shape = 'u32[144,128]{1,0:T(1,128)}', space=vmem, size = 0x12000, scoped, tag = 'internal scratch']
  %s0 = inlined_call_operand.hbm [shape: f32[16,112], index: 0, kind: input, shape index: {}]
  %s1 = inlined_call_operand.hbm [shape: f32[9,112], index: 1, kind: input, shape index: {}]
  %s2 = inlined_call_operand.hbm [shape: f32[16,112], index: 2, kind: output, shape index: {}]
  %s3 = sld [smem:[#allocation0]]
  $region49: #{tpu_custom_call.1} parent=0
    _
  %s5 = ssub.s32 1, %s3
  %s6 = scalar_select 0, %s5, %s3
  $region1: #{tpu_custom_call.1} parent=0
    #allocation2 [shape = 'u8[8192]{0}', space=vmem, size = 0x2000, scoped, tag = 'input window, operand 0']
    #allocation3 [shape = 's32[2]{0}', space=sflag, size = 0x8, scoped, tag = 'scoped memory for tpu_custom_call.1']
    #allocation4 [shape = 's32[2]{0}', space=sflag, size = 0x8, scoped, tag = 'scoped memory for tpu_custom_call.1']
    #allocation5 [shape = 'u8[8192]{0}', space=vmem, size = 0x2000, scoped, tag = 'input window, operand 1, single buffered']
    #allocation6 [shape = 's32[1]{0}', space=sflag, size = 0x4, scoped, tag = 'scoped memory for tpu_custom_call.1']
    #allocation7 [shape = 'u8[8192]{0}', space=vmem, size = 0x2000, scoped, tag = 'output window, operand 0']
    %7 = vsyncpa [#allocation3], 0
    %s8 = scalar_lea.sflag [#allocation3], 1
    %9 = vsyncpa %s8, 0
    %10 = vsyncpa [#allocation6], 0
    %11 = vsyncpa [#allocation4], 0
    %s12 = scalar_lea.sflag [#allocation4], 1
    %13 = vsyncpa %s12, 0
    loop: start=0, step=1, limit=4
    $region2: #{tpu_custom_call.1} parent=1 // loop_pre_header
      _
    $region3: #{tpu_custom_call.1} parent=1 // loop_header
      %s15 = sphi 0, %s19
      %p16 = scmp.ge.s32.totalorder %s15, 4
      %s25 = sphi 0, %s27
      %s28 = sphi 0, %s25
      %s29 = sphi 0, %s28
      %s45 = sphi 0, %s29
      %s49 = sphi 0, %s49
      %s51 = sphi 0, %s49
      %s52 = sphi 0, %s51
      %s66 = sphi 0, %s52
      %s72 = sphi 0, %s74
      %s75 = sphi 0, %s72
      %s76 = sphi 0, %s75
      %s92 = sphi 0, %s76
    $region4: #{tpu_custom_call.1} parent=1 // loop_header_branch
      %18 = sbr.rel (%p16) target = $region8
    $region5: #{tpu_custom_call.1} parent=1 // loop_body
      %s20 = ssub.s32 %s15, 1
      %s21 = ssub.s32 %s15, 2
      %s22 = sadd.s32 %s15, 1
      %s23 = ssub.s32 %s15, %s22
      %p24 = scmp.eq.s32.totalorder %s23, 0
      %s26 = sadd.s32 %s25, 1
      %s27 = scalar_select %p24, %s25, %s26
      %p30 = pneg %p24
      %p31 = scmp.eq.s32.totalorder %s15, 1
      %p32 = por %p30, %p31
      %p33 = scmp.ne.s32.totalorder %s25, %s28
      %p34 = scmp.eq.s32.totalorder %s15, 0
      %p35 = por %p33, %p34
      %p36 = scmp.ne.s32.totalorder %s25, %s28
      %p37 = scmp.eq.s32.totalorder %s20, 1
      %p38 = por %p36, %p37
      %p39 = scmp.ne.s32.totalorder %s28, %s29
      %p40 = scmp.eq.s32.totalorder %s20, 0
      %p41 = por %p39, %p40
      %p42 = scmp.ne.s32.totalorder %s28, %s29
      %p43 = scmp.eq.s32.totalorder %s21, 1
      %p44 = por %p42, %p43
      %p46 = scmp.ne.s32.totalorder %s29, %s45
      %p47 = scmp.eq.s32.totalorder %s21, 0
      %p48 = por %p46, %p47
      %s50 = sadd.s32 %s49, 1
      %p53 = scmp.eq.s32.totalorder %s15, 1
      %p54 = scmp.ne.s32.totalorder %s49, %s51
      %p55 = scmp.eq.s32.totalorder %s15, 0
      %p56 = por %p54, %p55
      %p57 = scmp.ne.s32.totalorder %s49, %s51
      %p58 = scmp.eq.s32.totalorder %s20, 1
      %p59 = por %p57, %p58
      %p60 = scmp.ne.s32.totalorder %s51, %s52
      %p61 = scmp.eq.s32.totalorder %s20, 0
      %p62 = por %p60, %p61
      %p63 = scmp.ne.s32.totalorder %s51, %s52
      %p64 = scmp.eq.s32.totalorder %s21, 1
      %p65 = por %p63, %p64
      %p67 = scmp.ne.s32.totalorder %s52, %s66
      %p68 = scmp.eq.s32.totalorder %s21, 0
      %p69 = por %p67, %p68
      %s70 = ssub.s32 %s15, %s22
      %p71 = scmp.eq.s32.totalorder %s70, 0
      %s73 = sadd.s32 %s72, 1
      %s74 = scalar_select %p71, %s72, %s73
      %p77 = pneg %p71
      %p78 = scmp.eq.s32.totalorder %s15, 1
      %p79 = por %p77, %p78
      %p80 = scmp.ne.s32.totalorder %s72, %s75
      %p81 = scmp.eq.s32.totalorder %s15, 0
      %p82 = por %p80, %p81
      %p83 = scmp.ne.s32.totalorder %s72, %s75
      %p84 = scmp.eq.s32.totalorder %s20, 1
      %p85 = por %p83, %p84
      %p86 = scmp.ne.s32.totalorder %s75, %s76
      %p87 = scmp.eq.s32.totalorder %s20, 0
      %p88 = por %p86, %p87
      %p89 = scmp.ne.s32.totalorder %s75, %s76
      %p90 = scmp.eq.s32.totalorder %s21, 1
      %p91 = por %p89, %p90
      %p93 = scmp.ne.s32.totalorder %s76, %s92
      %p94 = scmp.eq.s32.totalorder %s21, 0
      %p95 = por %p93, %p94
      %p96 = scmp.le.s32.totalorder 1, %s15
      %p97 = scmp.lt.s32.totalorder %s15, 3
      %p98 = pnand %p96, %p97
      %p99 = pneg %p98
      // Predicated region
      $region9: #{tpu_custom_call.1} parent=5 // pred_check
        _
      $region10: #{tpu_custom_call.1} parent=5 // pred_check_branch
        %101 = sbr.rel (%p98) target = $region12
      $region11: #{tpu_custom_call.1} parent=5 // pred_region
        %s102 = ssub.s32 %s15, 1
        // Predicated region
        $region13: #{tpu_custom_call.1} parent=11 // pred_check
          %p103 = pneg %p62
        $region14: #{tpu_custom_call.1} parent=11 // pred_check_branch
          %105 = sbr.rel (%p103) target = $region16
        $region15: #{tpu_custom_call.1} parent=11 // pred_region
          %s107 = ssub.s32 256, 256
          %108 = vsyncadd [#allocation6], %s107
          %s109 = sshll.u32 [#allocation5], 4
          %s110 = int_to_ptr.vmem [resolvable:$true] %s109
          %115 = dma.hbm_to_vmem [thread:$0]  %s1, 256, %s110, [#allocation6], 128, 128, 8
        $region16: #{tpu_custom_call.1} parent=11 // pred_fallthru
          _
      $region12: #{tpu_custom_call.1} parent=5 // pred_fallthru
        _
      %p116 = scmp.lt.s32.totalorder %s15, 2
      // Predicated region
      $region17: #{tpu_custom_call.1} parent=5 // pred_check
        %p117 = pneg %p116
      $region18: #{tpu_custom_call.1} parent=5 // pred_check_branch
        %119 = sbr.rel (%p117) target = $region20
      $region19: #{tpu_custom_call.1} parent=5 // pred_region
        // Predicated region
        $region21: #{tpu_custom_call.1} parent=19 // pred_check
          %p120 = pneg %p35
        $region22: #{tpu_custom_call.1} parent=19 // pred_check_branch
          %122 = sbr.rel (%p120) target = $region24
        $region23: #{tpu_custom_call.1} parent=19 // pred_region
          %s123 = sand.u32 %s25, 1
          %s124 = scalar_lea.sflag [#allocation3], %s123
          %s125 = sand.u32 %s25, 1
          %s126 = smul.addr %s125, 8
          %s127 = scalar_lea.vmem [#allocation2], %s126
          %s129 = ssub.s32 128, 128
          %130 = vsyncadd %s124, %s129
          %s131 = smul.addr %s15, 128
          %s132 = scalar_lea.hbm %s0, %s131
          %s134 = sshll.u32 %s127, 4
          %s135 = int_to_ptr.vmem [resolvable:$true] %s134
          %137 = dma.hbm_to_vmem [thread:$0]  %s132, 128, %s135, %s124
        $region24: #{tpu_custom_call.1} parent=19 // pred_fallthru
          _
      $region20: #{tpu_custom_call.1} parent=5 // pred_fallthru
        _
      %p138 = scmp.le.s32.totalorder 1, %s15
      %p139 = scmp.lt.s32.totalorder %s15, 3
      %p140 = pnand %p138, %p139
      %p141 = pneg %p140
      // Predicated region
      $region25: #{tpu_custom_call.1} parent=5 // pred_check
        _
      $region26: #{tpu_custom_call.1} parent=5 // pred_check_branch
        %143 = sbr.rel (%p140) target = $region28
      $region27: #{tpu_custom_call.1} parent=5 // pred_region
        %s144 = ssub.s32 %s15, 1
        %s145 = sand.u32 %s28, 1
        %s146 = scalar_lea.sflag [#allocation3], %s145
        %s147 = sand.u32 %s28, 1
        %s148 = smul.addr %s147, 8
        %s149 = scalar_lea.vmem [#allocation2], %s148
        // Predicated region
        $region29: #{tpu_custom_call.1} parent=27 // pred_check
          %p150 = pneg %p41
        $region30: #{tpu_custom_call.1} parent=27 // pred_check_branch
          %152 = sbr.rel (%p150) target = $region32
        $region31: #{tpu_custom_call.1} parent=27 // pred_region
          %153 = dma.done %s146, 128
        $region32: #{tpu_custom_call.1} parent=27 // pred_fallthru
          _
        // Predicated region
        $region33: #{tpu_custom_call.1} parent=27 // pred_check
          %p154 = pneg %p62
        $region34: #{tpu_custom_call.1} parent=27 // pred_check_branch
          %156 = sbr.rel (%p154) target = $region36
        $region35: #{tpu_custom_call.1} parent=27 // pred_region
          %157 = dma.done [#allocation6], 256
        $region36: #{tpu_custom_call.1} parent=27 // pred_fallthru
          _
        %s158 = sand.u32 %s28, 1
        %s159 = scalar_lea.sflag [#allocation3], %s158
        %s160 = sand.u32 %s28, 1
        %s161 = smul.addr %s160, 8
        %s162 = scalar_lea.vmem [#allocation2], %s161
        %p163 = pneg %p41
        %p164 = pneg %p38
        %p165 = pneg %p62
        %p166 = pneg %p59
        %p167 = pneg %p88
        %p168 = pneg %p85
        %s169 = sand.u32 %s75, 1
        %s170 = scalar_lea.sflag [#allocation4], %s169
        %s171 = sand.u32 %s75, 1
        %s172 = smul.addr %s171, 8
        %s173 = scalar_lea.vmem [#allocation7], %s172
        %v174 = vld [vmem:[%s149] sm:$0xff]
        %v175 = vld [vmem:[#allocation5 + $0x7] sm:$0x1]
        %v176 = vld [vmem:[#allocation5 + $0x3] sm:$0x1]
        %v177 = vlaneseq
        %v178 = vshrl.u32 %v177, 7
        %v179 = vsub.s32 0, %v178
        %v180 = vrot.slane %v176, %v179
        %v181 = vmul.f32 %v174, %v180
        %v182 = vlaneseq
        %v183 = vshrl.u32 %v182, 7
        %v184 = vsub.s32 0, %v183
        %v185 = vrot.slane %v175, %v184
        %v186 = vadd.f32 %v185, %v181
        %vm187 = vcmask 1048448
        %188 = vrot.lane.b32.xlu0 %v174, 112
        %v189 = vpop.permute.xlu0 %188
        %v190 = vsel %vm187, %v189, %v174
        %191 = vrot.lane.b32.xlu0 %v190, 112
        %v192 = vpop.permute.xlu0 %191
        %v193 = vsel %vm187, %v192, %v174
        %v194 = vld [vmem:[#allocation5] sm:$0x1]
        %v195 = vlaneseq
        %v196 = vshrl.u32 %v195, 7
        %v197 = vsub.s32 0, %v196
        %v198 = vrot.slane %v194, %v197
        %200 = vrot.lane.b32.xlu0 %v198, 3
        %v201 = vpop.permute.xlu0 %200
        %v203 = vmul.f32 %v193, %v201
        %205 = vrot.lane.b32.xlu0 %v203, 125
        %v206 = vpop.permute.xlu0 %205
        %v208 = vadd.f32 %v186, %v206
        %v209 = vld [vmem:[#allocation5 + $0x1] sm:$0x1]
        %v210 = vlaneseq
        %v211 = vshrl.u32 %v210, 7
        %v212 = vsub.s32 0, %v211
        %v213 = vrot.slane %v209, %v212
        %215 = vrot.lane.b32.xlu0 %v213, 2
        %v216 = vpop.permute.xlu0 %215
        %v218 = vmul.f32 %v193, %v216
        %220 = vrot.lane.b32.xlu0 %v218, 126
        %v221 = vpop.permute.xlu0 %220
        %v223 = vadd.f32 %v208, %v221
        %v224 = vld [vmem:[#allocation5 + $0x2] sm:$0x1]
        %v225 = vlaneseq
        %v226 = vshrl.u32 %v225, 7
        %v227 = vsub.s32 0, %v226
        %v228 = vrot.slane %v224, %v227
        %230 = vrot.lane.b32.xlu0 %v228, 1
        %v231 = vpop.permute.xlu0 %230
        %v233 = vmul.f32 %v193, %v231
        %235 = vrot.lane.b32.xlu0 %v233, 127
        %v236 = vpop.permute.xlu0 %235
        %v238 = vadd.f32 %v223, %v236
        %v239 = vld [vmem:[#allocation5 + $0x4] sm:$0x1]
        %v240 = vlaneseq
        %v241 = vshrl.u32 %v240, 7
        %v242 = vsub.s32 0, %v241
        %v243 = vrot.slane %v239, %v242
        %245 = vrot.lane.b32.xlu0 %v243, 111
        %v246 = vpop.permute.xlu0 %245
        %v248 = vmul.f32 %v193, %v246
        %v249 = vmul.f32 %v192, %v246
        %252 = vrot.lane.b32.xlu0 %v248, 17
        %v253 = vpop.permute.xlu0 %252
        %254 = vrot.lane.b32.xlu0 %v249, 17
        %v255 = vpop.permute.xlu0 %254
        %vm256 = vcmask 138240
        %v257 = vsel %vm256, %v253, %v255
        %v259 = vadd.f32 %v238, %v257
        %v260 = vld [vmem:[#allocation5 + $0x5] sm:$0x1]
        %v261 = vlaneseq
        %v262 = vshrl.u32 %v261, 7
        %v263 = vsub.s32 0, %v262
        %v264 = vrot.slane %v260, %v263
        %266 = vrot.lane.b32.xlu0 %v264, 110
        %v267 = vpop.permute.xlu0 %266
        %v269 = vmul.f32 %v193, %v267
        %v270 = vmul.f32 %v192, %v267
        %273 = vrot.lane.b32.xlu0 %v269, 18
        %v274 = vpop.permute.xlu0 %273
        %275 = vrot.lane.b32.xlu0 %v270, 18
        %v276 = vpop.permute.xlu0 %275
        %vm277 = vcmask 146432
        %v278 = vsel %vm277, %v274, %v276
        %v280 = vadd.f32 %v259, %v278
        %v281 = vld [vmem:[#allocation5 + $0x6] sm:$0x1]
        %v282 = vlaneseq
        %v283 = vshrl.u32 %v282, 7
        %v284 = vsub.s32 0, %v283
        %v285 = vrot.slane %v281, %v284
        %287 = vrot.lane.b32.xlu0 %v285, 109
        %v288 = vpop.permute.xlu0 %287
        %v290 = vmul.f32 %v193, %v288
        %v291 = vmul.f32 %v192, %v288
        %294 = vrot.lane.b32.xlu0 %v290, 19
        %v295 = vpop.permute.xlu0 %294
        %296 = vrot.lane.b32.xlu0 %v291, 19
        %v297 = vpop.permute.xlu0 %296
        %vm298 = vcmask 154624
        %v299 = vsel %vm298, %v295, %v297
        %v301 = vadd.f32 %v280, %v299
        %v302 = vld [vmem:[#allocation5 + $0x8] sm:$0x1]
        %v303 = vlaneseq
        %v304 = vshrl.u32 %v303, 7
        %v305 = vsub.s32 0, %v304
        %v306 = vrot.slane %v302, %v305
        %v307 = vmax.f32 %v301, %v306
        %vm308 = vcmask 916480
        %309 = vst.msk [vmem:[%s173] sm:$0xff] %vm308, %v307
        %s310 = sand.u32 %s75, 1
        %s311 = scalar_lea.sflag [#allocation4], %s310
        %s312 = sand.u32 %s75, 1
        %s313 = smul.addr %s312, 8
        %s314 = scalar_lea.vmem [#allocation7], %s313
        // Predicated region
        $region37: #{tpu_custom_call.1} parent=27 // pred_check
          %p315 = pneg %p85
        $region38: #{tpu_custom_call.1} parent=27 // pred_check_branch
          %317 = sbr.rel (%p315) target = $region40
        $region39: #{tpu_custom_call.1} parent=27 // pred_region
          %s319 = ssub.s32 128, 128
          %320 = vsyncadd %s311, %s319
          %s321 = smul.addr %s20, 128
          %s322 = scalar_lea.hbm %s2, %s321
          %s324 = sshll.u32 %s314, 4
          %s325 = int_to_ptr.vmem [resolvable:$true] %s324
          %327 = dma.vmem_to_hbm [thread:$0]  %s325, 128, %s322, %s311
        $region40: #{tpu_custom_call.1} parent=27 // pred_fallthru
          _
      $region28: #{tpu_custom_call.1} parent=5 // pred_fallthru
        _
      %p328 = scmp.le.s32.totalorder 2, %s15
      // Predicated region
      $region41: #{tpu_custom_call.1} parent=5 // pred_check
        %p329 = pneg %p328
      $region42: #{tpu_custom_call.1} parent=5 // pred_check_branch
        %331 = sbr.rel (%p329) target = $region44
      $region43: #{tpu_custom_call.1} parent=5 // pred_region
        %s332 = ssub.s32 %s15, 2
        // Predicated region
        $region45: #{tpu_custom_call.1} parent=43 // pred_check
          %p333 = pneg %p91
        $region46: #{tpu_custom_call.1} parent=43 // pred_check_branch
          %335 = sbr.rel (%p333) target = $region48
        $region47: #{tpu_custom_call.1} parent=43 // pred_region
          %s336 = sand.u32 %s76, 1
          %s337 = scalar_lea.sflag [#allocation4], %s336
          %s338 = sand.u32 %s76, 1
          %s339 = smul.addr %s338, 8
          %s340 = scalar_lea.vmem [#allocation7], %s339
          %341 = dma.done %s337, 128
        $region48: #{tpu_custom_call.1} parent=43 // pred_fallthru
          _
      $region44: #{tpu_custom_call.1} parent=5 // pred_fallthru
        _
    $region6: #{tpu_custom_call.1} parent=1 // loop_footer
      %s19 = sadd.s32 1, %s15
    $region7: #{tpu_custom_call.1} parent=1 // loop_footer_branch
      %14 = sbr.rel target = $region3
    $region8: #{tpu_custom_call.1} parent=1 // loop_exit
      _
    %342 = vsyncpa [#allocation3], 1
    %s343 = scalar_lea.sflag [#allocation3], 1
    %344 = vsyncpa %s343, 1
    %345 = vsyncpa [#allocation6], 1
    %346 = vsyncpa [#allocation4], 1
    %s347 = scalar_lea.sflag [#allocation4], 1
    %348 = vsyncpa %s347, 1

// kernel: tpu_custom_call.1
$region0: #{tpu_custom_call.1}
  #allocation0 [shape = 'u32[]', space=smem, size = 0x4, offset = 0x4, fixed_abs, tag = 'smem constant byte address 0x4 - core index']
  #allocation1 [shape = 'u32[144,128]{1,0:T(1,128)}', space=vmem, size = 0x12000, scoped, tag = 'internal scratch']
  %s0 = inlined_call_operand.hbm [shape: f32[1,112], index: 0, kind: input, shape index: {}]
  %s1 = inlined_call_operand.hbm [shape: f32[112,112], index: 1, kind: input, shape index: {}]
  %s2 = inlined_call_operand.vmem [shape: f32[3,112], index: 2, kind: input, shape index: {}]
  %s3 = inlined_call_operand.hbm [shape: f32[1,112], index: 3, kind: output, shape index: {}]
  %s4 = sld [smem:[#allocation0]]
  $region30: #{tpu_custom_call.1} parent=0
    _
  %s6 = ssub.s32 1, %s4
  %s7 = scalar_select 0, %s6, %s4
  $region1: #{tpu_custom_call.1} parent=0
    #allocation2 [shape = 'u8[512]{0}', space=vmem, size = 0x400, scoped, tag = 'input window, operand 0, single buffered']
    #allocation3 [shape = 's32[1]{0}', space=sflag, size = 0x4, scoped, tag = 'scoped memory for tpu_custom_call.1']
    #allocation4 [shape = 's32[1]{0}', space=sflag, size = 0x4, scoped, tag = 'scoped memory for tpu_custom_call.1']
    #allocation5 [shape = 'u8[57344]{0}', space=vmem, size = 0xe000, scoped, tag = 'input window, operand 1, single buffered']
    #allocation6 [shape = 's32[1]{0}', space=sflag, size = 0x4, scoped, tag = 'scoped memory for tpu_custom_call.1']
    #allocation7 [shape = 'u8[512]{0}', space=vmem, size = 0x400, scoped, tag = 'output window, operand 0, single buffered']
    %8 = vsyncpa [#allocation3], 0
    %9 = vsyncpa [#allocation6], 0
    %10 = vsyncpa [#allocation4], 0
    // Predicated region
    $region2: #{tpu_custom_call.1} parent=1 // pred_check
      _
    $region3: #{tpu_custom_call.1} parent=1 // pred_check_branch
      %12 = sbr.rel (0) target = $region5
    $region4: #{tpu_custom_call.1} parent=1 // pred_region
      %s14 = ssub.s32 16, 16
      %15 = vsyncadd [#allocation3], %s14
      %s17 = sshll.u32 [#allocation2], 4
      %s18 = int_to_ptr.vmem [resolvable:$true] %s17
      %20 = dma.hbm_to_vmem [thread:$0]  %s0, 16, %s18, [#allocation3]
    $region5: #{tpu_custom_call.1} parent=1 // pred_fallthru
      _
    // Predicated region
    $region6: #{tpu_custom_call.1} parent=1 // pred_check
      _
    $region7: #{tpu_custom_call.1} parent=1 // pred_check_branch
      %22 = sbr.rel (0) target = $region9
    $region8: #{tpu_custom_call.1} parent=1 // pred_region
      %s24 = ssub.s32 1792, 1792
      %25 = vsyncadd [#allocation6], %s24
      %s26 = sshll.u32 [#allocation5], 4
      %s27 = int_to_ptr.vmem [resolvable:$true] %s26
      %32 = dma.hbm_to_vmem [thread:$0]  %s1, 1792, %s27, [#allocation6], 128, 128, 8
    $region9: #{tpu_custom_call.1} parent=1 // pred_fallthru
      _
    // Predicated region
    $region10: #{tpu_custom_call.1} parent=1 // pred_check
      _
    $region11: #{tpu_custom_call.1} parent=1 // pred_check_branch
      %34 = sbr.rel (0) target = $region13
    $region12: #{tpu_custom_call.1} parent=1 // pred_region
      _
    $region13: #{tpu_custom_call.1} parent=1 // pred_fallthru
      _
    // Predicated region
    $region14: #{tpu_custom_call.1} parent=1 // pred_check
      _
    $region15: #{tpu_custom_call.1} parent=1 // pred_check_branch
      %36 = sbr.rel (0) target = $region17
    $region16: #{tpu_custom_call.1} parent=1 // pred_region
      %37 = dma.done [#allocation3], 16
    $region17: #{tpu_custom_call.1} parent=1 // pred_fallthru
      _
    // Predicated region
    $region18: #{tpu_custom_call.1} parent=1 // pred_check
      _
    $region19: #{tpu_custom_call.1} parent=1 // pred_check_branch
      %39 = sbr.rel (0) target = $region21
    $region20: #{tpu_custom_call.1} parent=1 // pred_region
      %40 = dma.done [#allocation6], 1792
    $region21: #{tpu_custom_call.1} parent=1 // pred_fallthru
      _
    %v41 = vld [vmem:[#allocation2] sm:$0x1]
    %v42 = vld [vmem:[#allocation5] sm:$0xff]
    %v43 = vld [vmem:[#allocation5 + $0x8] sm:$0xff]
    %v44 = vld [vmem:[#allocation5 + $0x10] sm:$0xff]
    %v45 = vld [vmem:[#allocation5 + $0x18] sm:$0xff]
    %v46 = vld [vmem:[#allocation5 + $0x20] sm:$0xff]
    %v47 = vld [vmem:[#allocation5 + $0x28] sm:$0xff]
    %v48 = vld [vmem:[#allocation5 + $0x30] sm:$0xff]
    %v49 = vld [vmem:[#allocation5 + $0x38] sm:$0xff]
    %v50 = vld [vmem:[#allocation5 + $0x40] sm:$0xff]
    %v51 = vld [vmem:[#allocation5 + $0x48] sm:$0xff]
    %v52 = vld [vmem:[#allocation5 + $0x50] sm:$0xff]
    %v53 = vld [vmem:[#allocation5 + $0x58] sm:$0xff]
    %v54 = vld [vmem:[#allocation5 + $0x60] sm:$0xff]
    %v55 = vld [vmem:[#allocation5 + $0x68] sm:$0xff]
    %v56 = vld [vmem:[%s2 + $0x1] sm:$0x1]
    %v57 = vmul.f32 %v41, %v56
    %vm58 = vcmask 916480
    %v60 = vsel %vm58, %v41, 0
    %62 = vmatprep.subr.mxu0 0.0
    %63 = vmatpush1.msra.mxu0 %v42
    %64 = vmatprep.subr.mxu0 0.0
    %65 = vmatpush1.msra.mxu0 %v43
    %66 = vmatprep.subr.mxu0 0.0
    %67 = vmatpush1.msra.mxu0 %v44
    %68 = vmatprep.subr.mxu0 0.0
    %69 = vmatpush1.msra.mxu0 %v45
    %70 = vmatprep.subr.mxu0 0.0
    %71 = vmatpush1.msra.mxu0 %v46
    %72 = vmatprep.subr.mxu0 0.0
    %73 = vmatpush1.msra.mxu0 %v47
    %74 = vmatprep.subr.mxu0 0.0
    %75 = vmatpush1.msra.mxu0 %v48
    %76 = vmatprep.subr.mxu0 0.0
    %77 = vmatpush1.msra.mxu0 %v49
    %78 = vmatprep.subr.mxu0 0.0
    %79 = vmatpush1.msra.mxu0 %v50
    %80 = vmatprep.subr.mxu0 0.0
    %81 = vmatpush1.msra.mxu0 %v51
    %82 = vmatprep.subr.mxu0 0.0
    %83 = vmatpush1.msra.mxu0 %v52
    %84 = vmatprep.subr.mxu0 0.0
    %85 = vmatpush1.msra.mxu0 %v53
    %86 = vmatprep.subr.mxu0 0.0
    %87 = vmatpush1.msra.mxu0 %v54
    %88 = vmatprep.subr.mxu0 0.0
    %89 = vmatpush1.msra.mxu0 %v55
    %90 = vmatprep.subr.mxu0 0.0
    %91 = vmatpush1.msra.mxu0 0.0
    %92 = vmatprep.subr.mxu0 0.0
    %93 = vmatpush1.msra.mxu0 0.0
    %94 = vmatprep.subr.mxu0 0.0
    %95 = vmatpush1.msra.mxu0 0.0
    %96 = vmatprep.subr.mxu0 0.0
    %97 = vmatpush1.msra.mxu0 0.0
    %98 = vmatprep.subr.mxu0 0.0
    %99 = vmatpush1.msra.mxu0 0.0
    %100 = vmatprep.subr.mxu0 0.0
    %101 = vmatpush1.msra.mxu0 0.0
    %102 = vmatprep.subr.mxu0 0.0
    %103 = vmatpush1.msra.mxu0 0.0
    %104 = vmatprep.subr.mxu0 0.0
    %105 = vmatpush1.msra.mxu0 0.0
    %106 = vmatprep.subr.mxu0 0.0
    %107 = vmatpush1.msra.mxu0 0.0
    %108 = vmatprep.subr.mxu0 0.0
    %109 = vmatpush1.msra.mxu0 0.0
    %110 = vmatprep.subr.mxu0 0.0
    %111 = vmatpush1.msra.mxu0 0.0
    %112 = vmatprep.subr.mxu0 0.0
    %113 = vmatpush1.msra.mxu0 0.0
    %114 = vmatprep.subr.mxu0 0.0
    %115 = vmatpush1.msra.mxu0 0.0
    %116 = vmatprep.subr.mxu0 0.0
    %117 = vmatpush1.msra.mxu0 0.0
    %118 = vmatprep.subr.mxu0 0.0
    %119 = vmatpush1.msra.mxu0 0.0
    %120 = vmatprep.subr.mxu0 0.0
    %121 = vmatpush1.msra.mxu0 0.0
    %122 = vmatprep.subr.mxu0 0.0
    %123 = vmatpush1.msra.mxu0 0.0
    %124 = vmatprep.subr.mxu0 0.0
    %125 = vmatpush1.msra.mxu0 0.0
    %126 = vmatprep.mubr.f32.mxu0 0.0
    %127 = vmatmul.mubr.f32.gmra.mrb[0].mxu0 %v60
    %v128 = vpop.f32.mrb[0].mxu0
    %v129 = vadd.f32 %v57, %v128
    %v130 = vpop.f32.mrb[0].mxu0
    %131 = vdwg.mxu0
    %v132 = vld [vmem:[%s2] sm:$0x1]
    %v133 = vadd.f32 %v129, %v132
    %v134 = vld [vmem:[%s2 + $0x2] sm:$0x1]
    %v135 = vmax.f32 %v133, %v134
    %vm136 = vcmask 909312
    %137 = vst.msk [vmem:[#allocation7] sm:$0x1] %vm136, %v135
    // Predicated region
    $region22: #{tpu_custom_call.1} parent=1 // pred_check
      _
    $region23: #{tpu_custom_call.1} parent=1 // pred_check_branch
      %139 = sbr.rel (0) target = $region25
    $region24: #{tpu_custom_call.1} parent=1 // pred_region
      %s141 = ssub.s32 16, 16
      %142 = vsyncadd [#allocation4], %s141
      %s144 = sshll.u32 [#allocation7], 4
      %s145 = int_to_ptr.vmem [resolvable:$true] %s144
      %147 = dma.vmem_to_hbm [thread:$0]  %s145, 16, %s3, [#allocation4]
    $region25: #{tpu_custom_call.1} parent=1 // pred_fallthru
      _
    // Predicated region
    $region26: #{tpu_custom_call.1} parent=1 // pred_check
      _
    $region27: #{tpu_custom_call.1} parent=1 // pred_check_branch
      %149 = sbr.rel (0) target = $region29
    $region28: #{tpu_custom_call.1} parent=1 // pred_region
      %150 = dma.done [#allocation4], 16
    $region29: #{tpu_custom_call.1} parent=1 // pred_fallthru
      _
    %151 = vsyncpa [#allocation3], 1
    %152 = vsyncpa [#allocation6], 1
    %153 = vsyncpa [#allocation4], 1

</llo_original>
